<compile_context>
chip_gen: v5e
topology: v5e:2x2
jax: 0.10.0
libtpu: 0.0.40
codegen_flags: <defaults>
</compile_context>

<pallas_src>
import numpy as np
import jax
import jax.numpy as jnp
from jax import lax
from jax.experimental import pallas as pl
from jax.experimental.pallas import tpu as pltpu

EPS = 1e-5
MA_KERNEL = 25  # DLinear default moving-average kernel size


def _build_ma_matrix(seq_len: int, kernel_size: int) -> np.ndarray:
    """[L, L] matrix M s.t. (x @ M) == replicate-padded moving average of x."""
    pad = (kernel_size - 1) // 2
    M = np.zeros((seq_len, seq_len), dtype=np.float32)
    for t in range(seq_len):
        for i in range(t, t + kernel_size):
            j = min(max(i - pad, 0), seq_len - 1)
            M[j, t] += 1.0 / kernel_size
    return M


def _dlinear_revin_kernel(x_ref, w_ref, b_ref, gb_ref, o_ref):
    """x_ref: [TB, L, C] f32, w_ref: [P, L] bf16 (resident), b_ref: [P, 1] f32,
    gb_ref: [2, C] f32 (row0=gamma, row1=beta), o_ref: [TB, P, C] f32."""
    w = w_ref[...]                                   # [P, L] bf16
    bias = b_ref[...]                                # [P, 1] f32
    gb = gb_ref[...]                                 # [2, C]
    gamma = gb[0:1, :]                               # [1, C]
    beta = gb[1:2, :]                                # [1, C]
    inv_gamma = pl.reciprocal(gamma + EPS * EPS, approx=True)   # [1, C], EUP

    for b in range(x_ref.shape[0]):                  # static unroll, TB <= 8
        x = x_ref[b]                                 # [L, C] f32

        # ---- RevIN norm: per-(batch,channel) stats over time (sublanes) ----
        mean = jnp.mean(x, axis=0, keepdims=True)                        # [1, C]
        var = jnp.mean((x - mean) * (x - mean), axis=0, keepdims=True)   # biased
        rstd = lax.rsqrt(var + EPS)                                      # EUP
        std = (var + EPS) * rstd                                         # sqrt(var+eps)
        xn = (x - mean) * rstd * gamma + beta                            # [L, C] f32

        # ---- Fused DLinear: one bf16 MXU matmul, f32 accumulate ----
        out = jnp.dot(w, xn.astype(jnp.bfloat16),
                      preferred_element_type=jnp.float32)                # [P, C]
        out = out + bias

        # ---- RevIN denorm ----
        out = (out - beta) * inv_gamma * std + mean
        o_ref[b] = out.astype(o_ref.dtype)


def _round_up(x: int, m: int) -> int:
    return ((x + m - 1) // m) * m


def _choose_batch_tile(B: int, L: int, P: int, C: int) -> int:
    """Largest batch tile that (a) keeps >= 2 grid steps whenever B >= 2 so both
    v7x TensorCores get work, (b) keeps the double-buffered x+out footprint
    ~<= 12 MiB, (c) keeps the in-kernel unrolled loop short."""
    if B < 2:
        return 1
    per_b = (_round_up(L, 8) + _round_up(P, 8)) * _round_up(C, 128) * 4 * 2
    budget = 12 * 1024 * 1024
    return int(max(1, min(B // 2, 8, budget // max(per_b, 1))))


def dlinear_revin_forward(x_enc, params):
    """x_enc: [B, seq_len, C] float32  ->  [B, pred_len, C] float32."""
    B, L, C = x_enc.shape
    P = params["w_seasonal"].shape[0]

    # ---- Host-side algebraic fold: decomposition + both linears -> one weight
    ws_t = params["w_seasonal"].T.astype(jnp.float32)     # [L, P]
    wt_t = params["w_trend"].T.astype(jnp.float32)        # [L, P]
    ma = params["ma_matrix"].astype(jnp.float32)          # [L, L]
    w_eff = ws_t + ma @ (wt_t - ws_t)                     # [L, P]
    w_pl = jnp.asarray(w_eff.T, dtype=jnp.bfloat16)       # [P, L] bf16 MXU operand
    b_pl = (params["b_seasonal"] + params["b_trend"]).reshape(P, 1).astype(jnp.float32)
    gb = jnp.stack([params["affine_weight"].astype(jnp.float32),
                    params["affine_bias"].astype(jnp.float32)])          # [2, C]

    tb = _choose_batch_tile(B, L, P, C)
    b_pad = _round_up(B, tb)
    x_in = x_enc if b_pad == B else jnp.pad(
        x_enc, ((0, b_pad - B), (0, 0), (0, 0)))

    # ---- VMEM budget: 2x double-buffer applied once, lane/sublane padding in ----
    c_pad = _round_up(C, 128)
    l_sub, p_sub = _round_up(L, 8), _round_up(P, 8)
    buf_bytes = 2 * (tb * l_sub * c_pad * 4                   # x tiles
                     + tb * p_sub * c_pad * 4                 # out tiles
                     + _round_up(P, 16) * _round_up(L, 128) * 2   # bf16 weight
                     + p_sub * 128 * 4                        # bias
                     + 8 * c_pad * 4)                         # gamma/beta
    vmem_limit = int(min(max(buf_bytes + (2 << 20), 4 << 20), 32 << 20))

    grid = (b_pad // tb,)
    # TODO(synk): for extreme channel counts (C*~(L+P) tiles > ~24 MiB) add a
    # second lane-tiled grid axis over channels instead of taking all of C per step.
    out = pl.pallas_call(
        _dlinear_revin_kernel,
        out_shape=jax.ShapeDtypeStruct((b_pad, P, C), jnp.float32),
        grid=grid,
        in_specs=[
            pl.BlockSpec((tb, L, C), lambda i: (i, 0, 0)),   # native [B,L,C] tile
            pl.BlockSpec((P, L), lambda i: (0, 0)),          # fused weight (resident)
            pl.BlockSpec((P, 1), lambda i: (0, 0)),          # fused bias
            pl.BlockSpec((2, C), lambda i: (0, 0)),          # gamma / beta
        ],
        out_specs=pl.BlockSpec((tb, P, C), lambda i: (i, 0, 0)),
        # Batch-tile axis is independent work; "parallel" lets it shard across
        # TensorCores (v7x has 2 TCs) and grid >= 2 whenever B >= 2 guarantees
        # there is something to split.
        # TODO(synk): if profiling shows plain "parallel" does not shard on v7x,
        # switch this axis to pltpu.CORE_PARALLEL.
        compiler_params=pltpu.CompilerParams(
            dimension_semantics=("parallel",),
            vmem_limit_bytes=vmem_limit),
    )(x_in, w_pl, b_pl, gb)

    return out if b_pad == B else out[:B]


def make_params(seq_len, pred_len, channels, key):
    """Deterministic parameter init matching the module's __init__ shapes."""
    k1, k2, k3, k4 = jax.random.split(key, 4)
    bound = 1.0 / np.sqrt(seq_len)                           # nn.Linear default
    params = {
        # nn.Linear(seq_len, pred_len): weight [pred_len, seq_len], bias [pred]
        "w_seasonal": jax.random.uniform(k1, (pred_len, seq_len), jnp.float32,
                                         -bound, bound),
        "b_seasonal": jax.random.uniform(k2, (pred_len,), jnp.float32,
                                         -bound, bound),
        "w_trend": jax.random.uniform(k3, (pred_len, seq_len), jnp.float32,
                                      -bound, bound),
        "b_trend": jax.random.uniform(k4, (pred_len,), jnp.float32,
                                      -bound, bound),
        # RevIN affine params: ones / zeros (as in RevIN._init_params)
        "affine_weight": jnp.ones((channels,), jnp.float32),
        "affine_bias": jnp.zeros((channels,), jnp.float32),
        # precomputed replicate-padded moving-average matrix
        "ma_matrix": jnp.asarray(_build_ma_matrix(seq_len, MA_KERNEL)),
    }
    return params


def reference_forward(x, params):
    """Pure-JAX f32 replica of the PyTorch forward (unfused), for correctness."""
    B, L, C = x.shape
    gamma = params["affine_weight"]
    beta = params["affine_bias"]
    mean = x.mean(axis=1, keepdims=True)
    var = ((x - mean) ** 2).mean(axis=1, keepdims=True)
    std = jnp.sqrt(var + EPS)
    xn = (x - mean) / std * gamma + beta

    pad = (MA_KERNEL - 1) // 2
    front = jnp.repeat(xn[:, :1, :], pad, axis=1)
    end = jnp.repeat(xn[:, -1:, :], pad, axis=1)
    xp = jnp.concatenate([front, xn, end], axis=1)
    trend = jnp.stack(
        [xp[:, t:t + MA_KERNEL, :].mean(axis=1) for t in range(L)], axis=1)
    seasonal = xn - trend

    s_out = jnp.einsum("blc,pl->bpc", seasonal, params["w_seasonal"]) \
        + params["b_seasonal"][None, :, None]
    t_out = jnp.einsum("blc,pl->bpc", trend, params["w_trend"]) \
        + params["b_trend"][None, :, None]
    out = s_out + t_out
    out = (out - beta) / (gamma + EPS * EPS) * std + mean
    return out


if __name__ == "__main__":
    B, SEQ_LEN, PRED_LEN, C = 2, 16, 8, 4

    key = jax.random.PRNGKey(0)
    k_x, k_p = jax.random.split(key)
    x_enc = jax.random.normal(k_x, (B, SEQ_LEN, C), jnp.float32)
    params = make_params(SEQ_LEN, PRED_LEN, C, k_p)

    out = dlinear_revin_forward(x_enc, params)
    out = jax.block_until_ready(out)

    ref = reference_forward(x_enc, params)
    assert out.shape == (B, PRED_LEN, C)
    # bf16 MXU operands (weight + normalized activations) vs. the f32 reference:
    # tolerance loosened accordingly (accumulation is still f32).
    np.testing.assert_allclose(np.asarray(out), np.asarray(ref),
                               rtol=5e-2, atol=5e-2)
    print("KERNEL_OK")
</pallas_src>

<mosaic_0001>
module attributes {stable_mosaic.version = 11 : i64} {
  func.func @_dlinear_revin_kernel(%arg0: i32, %arg1: memref<1x16x4xf32, #tpu.memory_space<vmem>>, %arg2: memref<8x16xbf16, #tpu.memory_space<vmem>>, %arg3: memref<8x1xf32, #tpu.memory_space<vmem>>, %arg4: memref<2x4xf32, #tpu.memory_space<vmem>>, %arg5: memref<1x8x4xf32, #tpu.memory_space<vmem>>) attributes {dimension_semantics = [#tpu.dimension_semantics<parallel>], iteration_bounds = array<i64: 2>, scalar_prefetch = 0 : i64, scratch_operands = 0 : i64, tpu.core_type = #tpu.core_type<tc>, window_params = [{transform_indices = @transform_0, window_bounds = array<i64: 1, 16, 4>}, {pipeline_mode = #tpu.pipeline_mode<synchronous>, transform_indices = @transform_1, window_bounds = array<i64: 8, 16>}, {pipeline_mode = #tpu.pipeline_mode<synchronous>, transform_indices = @transform_2, window_bounds = array<i64: 8, 1>}, {pipeline_mode = #tpu.pipeline_mode<synchronous>, transform_indices = @transform_3, window_bounds = array<i64: 2, 4>}, {transform_indices = @transform_4, window_bounds = array<i64: 1, 8, 4>}]} {
    %c0 = arith.constant 0 : index
    %c0_0 = arith.constant 0 : index
    %0 = vector.load %arg2[%c0, %c0_0] : memref<8x16xbf16, #tpu.memory_space<vmem>>, vector<8x16xbf16>
    %c0_1 = arith.constant 0 : index
    %c0_2 = arith.constant 0 : index
    %1 = vector.load %arg3[%c0_1, %c0_2] : memref<8x1xf32, #tpu.memory_space<vmem>>, vector<8x1xf32>
    %c0_3 = arith.constant 0 : index
    %c0_4 = arith.constant 0 : index
    %2 = vector.load %arg4[%c0_3, %c0_4] : memref<2x4xf32, #tpu.memory_space<vmem>>, vector<2x4xf32>
    %3 = vector.extract_strided_slice %2 {offsets = [0, 0], sizes = [1, 4], strides = [1, 1]} : vector<2x4xf32> to vector<1x4xf32>
    %4 = vector.extract_strided_slice %2 {offsets = [1, 0], sizes = [1, 4], strides = [1, 1]} : vector<2x4xf32> to vector<1x4xf32>
    %cst = arith.constant 1.000000e-10 : f32
    %5 = vector.broadcast %cst : f32 to vector<1x4xf32>
    %6 = arith.addf %3, %5 : vector<1x4xf32>
    %7 = tpu.reciprocal %6 {approx = true} : vector<1x4xf32> -> vector<1x4xf32>
    %c0_5 = arith.constant 0 : index
    %c0_6 = arith.constant 0 : index
    %c0_7 = arith.constant 0 : index
    %8 = vector.load %arg1[%c0_5, %c0_6, %c0_7] : memref<1x16x4xf32, #tpu.memory_space<vmem>>, vector<1x16x4xf32>
    %9 = vector.shape_cast %8 : vector<1x16x4xf32> to vector<16x4xf32>
    %cst_8 = arith.constant dense<0.000000e+00> : vector<4xf32>
    %10 = vector.multi_reduction <add>, %9, %cst_8 [0] : vector<16x4xf32> to vector<4xf32>
    %11 = vector.shape_cast %10 : vector<4xf32> to vector<1x4xf32>
    %cst_9 = arith.constant 1.600000e+01 : f32
    %12 = vector.broadcast %cst_9 : f32 to vector<1x4xf32>
    %13 = arith.divf %11, %12 : vector<1x4xf32>
    %14 = vector.broadcast %13 : vector<1x4xf32> to vector<16x4xf32>
    %15 = arith.subf %9, %14 : vector<16x4xf32>
    %16 = vector.broadcast %13 : vector<1x4xf32> to vector<16x4xf32>
    %17 = arith.subf %9, %16 : vector<16x4xf32>
    %18 = arith.mulf %15, %17 : vector<16x4xf32>
    %cst_10 = arith.constant dense<0.000000e+00> : vector<4xf32>
    %19 = vector.multi_reduction <add>, %18, %cst_10 [0] : vector<16x4xf32> to vector<4xf32>
    %20 = vector.shape_cast %19 : vector<4xf32> to vector<1x4xf32>
    %cst_11 = arith.constant 1.600000e+01 : f32
    %21 = vector.broadcast %cst_11 : f32 to vector<1x4xf32>
    %22 = arith.divf %20, %21 : vector<1x4xf32>
    %cst_12 = arith.constant 9.99999974E-6 : f32
    %23 = vector.broadcast %cst_12 : f32 to vector<1x4xf32>
    %24 = arith.addf %22, %23 : vector<1x4xf32>
    %25 = math.rsqrt %24 : vector<1x4xf32>
    %cst_13 = arith.constant 9.99999974E-6 : f32
    %26 = vector.broadcast %cst_13 : f32 to vector<1x4xf32>
    %27 = arith.addf %22, %26 : vector<1x4xf32>
    %28 = arith.mulf %27, %25 : vector<1x4xf32>
    %29 = vector.broadcast %13 : vector<1x4xf32> to vector<16x4xf32>
    %30 = arith.subf %9, %29 : vector<16x4xf32>
    %31 = vector.broadcast %25 : vector<1x4xf32> to vector<16x4xf32>
    %32 = arith.mulf %30, %31 : vector<16x4xf32>
    %33 = vector.broadcast %3 : vector<1x4xf32> to vector<16x4xf32>
    %34 = arith.mulf %32, %33 : vector<16x4xf32>
    %35 = vector.broadcast %4 : vector<1x4xf32> to vector<16x4xf32>
    %36 = arith.addf %34, %35 : vector<16x4xf32>
    %37 = arith.truncf %36 : vector<16x4xf32> to vector<16x4xbf16>
    %cst_14 = arith.constant dense<0.000000e+00> : vector<8x4xf32>
    %38 = tpu.matmul %0, %37, %cst_14 {dimension_numbers = #tpu.dot_dimension_numbers<[1], [0], [0], [1], [0, 0, 1, 1], [], []>} : vector<8x16xbf16>, vector<16x4xbf16>, vector<8x4xf32> -> vector<8x4xf32>
    %39 = vector.broadcast %1 : vector<8x1xf32> to vector<8x4xf32>
    %40 = arith.addf %38, %39 : vector<8x4xf32>
    %41 = vector.broadcast %4 : vector<1x4xf32> to vector<8x4xf32>
    %42 = arith.subf %40, %41 : vector<8x4xf32>
    %43 = vector.broadcast %7 : vector<1x4xf32> to vector<8x4xf32>
    %44 = arith.mulf %42, %43 : vector<8x4xf32>
    %45 = vector.broadcast %28 : vector<1x4xf32> to vector<8x4xf32>
    %46 = arith.mulf %44, %45 : vector<8x4xf32>
    %47 = vector.broadcast %13 : vector<1x4xf32> to vector<8x4xf32>
    %48 = arith.addf %46, %47 : vector<8x4xf32>
    %c0_15 = arith.constant 0 : index
    %c0_16 = arith.constant 0 : index
    %c0_17 = arith.constant 0 : index
    %49 = vector.load %arg5[%c0_15, %c0_16, %c0_17] : memref<1x8x4xf32, #tpu.memory_space<vmem>>, vector<1x8x4xf32>
    %50 = vector.shape_cast %49 : vector<1x8x4xf32> to vector<8x4xf32>
    %51 = vector.shape_cast %48 : vector<8x4xf32> to vector<1x8x4xf32>
    tpu.vector_store %arg5[%c0_15, %c0_16, %c0_17], %51 {strides = array<i32>} : memref<1x8x4xf32, #tpu.memory_space<vmem>>, vector<1x8x4xf32>,
    return
  }
  func.func @transform_0(%arg0: i32) -> (i32, i32, i32) {
    %c0_i32 = arith.constant 0 : i32
    %c0_i32_0 = arith.constant 0 : i32
    %c0_i32_1 = arith.constant 0 : i32
    return %arg0, %c0_i32, %c0_i32_0 : i32, i32, i32
  }
  func.func @transform_1(%arg0: i32) -> (i32, i32) {
    %c0_i32 = arith.constant 0 : i32
    %c0_i32_0 = arith.constant 0 : i32
    %c0_i32_1 = arith.constant 0 : i32
    return %c0_i32, %c0_i32_0 : i32, i32
  }
  func.func @transform_2(%arg0: i32) -> (i32, i32) {
    %c0_i32 = arith.constant 0 : i32
    %c0_i32_0 = arith.constant 0 : i32
    %c0_i32_1 = arith.constant 0 : i32
    return %c0_i32, %c0_i32_0 : i32, i32
  }
  func.func @transform_3(%arg0: i32) -> (i32, i32) {
    %c0_i32 = arith.constant 0 : i32
    %c0_i32_0 = arith.constant 0 : i32
    %c0_i32_1 = arith.constant 0 : i32
    return %c0_i32, %c0_i32_0 : i32, i32
  }
  func.func @transform_4(%arg0: i32) -> (i32, i32, i32) {
    %c0_i32 = arith.constant 0 : i32
    %c0_i32_0 = arith.constant 0 : i32
    %c0_i32_1 = arith.constant 0 : i32
    return %arg0, %c0_i32, %c0_i32_0 : i32, i32, i32
  }
}

</mosaic_0001>

<llo_original>
// kernel: tpu_custom_call.1
$region0: #{tpu_custom_call.1}
  #allocation0 [shape = 'u32[]', space=smem, size = 0x4, offset = 0x4, fixed_abs, tag = 'smem constant byte address 0x4 - core index']
  #allocation1 [shape = 'u32[72,128]{1,0:T(1,128)}', space=vmem, size = 0x9000, scoped, tag = 'internal scratch']
  %s0 = inlined_call_operand.vmem [shape: f32[2,16,4], index: 0, kind: input, shape index: {}]
  %s1 = inlined_call_operand.vmem [shape: bf16[8,16], index: 1, kind: input, shape index: {}]
  %s2 = inlined_call_operand.vmem [shape: f32[8,1], index: 2, kind: input, shape index: {}]
  %s3 = inlined_call_operand.vmem [shape: f32[2,4], index: 3, kind: input, shape index: {}]
  %s4 = inlined_call_operand.vmem [shape: f32[2,8,4], index: 4, kind: output, shape index: {}]
  %s5 = sld [smem:[#allocation0]]
  $region49: #{tpu_custom_call.1} parent=0
    _
  %s7 = ssub.s32 1, %s5
  %s8 = scalar_select 0, %s7, %s5
  loop: start=0, step=1, limit=4
  $region2: #{tpu_custom_call.1} parent=0 // loop_pre_header
    _
  $region3: #{tpu_custom_call.1} parent=0 // loop_header
    %s10 = sphi 0, %s14
    %p11 = scmp.ge.s32.totalorder %s10, 4
    %s20 = sphi 0, %s22
    %s23 = sphi 0, %s20
    %s24 = sphi 0, %s23
    %s40 = sphi 0, %s24
    %s44 = sphi 0, %s44
    %s46 = sphi 0, %s44
    %s47 = sphi 0, %s46
    %s61 = sphi 0, %s47
    %s65 = sphi 0, %s65
    %s67 = sphi 0, %s65
    %s68 = sphi 0, %s67
    %s82 = sphi 0, %s68
    %s86 = sphi 0, %s86
    %s88 = sphi 0, %s86
    %s89 = sphi 0, %s88
    %s103 = sphi 0, %s89
    %s109 = sphi 0, %s111
    %s112 = sphi 0, %s109
    %s113 = sphi 0, %s112
    %s129 = sphi 0, %s113
  $region4: #{tpu_custom_call.1} parent=0 // loop_header_branch
    %13 = sbr.rel (%p11) target = $region8
  $region5: #{tpu_custom_call.1} parent=0 // loop_body
    %s15 = ssub.s32 %s10, 1
    %s16 = ssub.s32 %s10, 2
    %s17 = sadd.s32 %s10, 1
    %s18 = ssub.s32 %s10, %s17
    %p19 = scmp.eq.s32.totalorder %s18, 0
    %s21 = sadd.s32 %s20, 1
    %s22 = scalar_select %p19, %s20, %s21
    %p25 = pneg %p19
    %p26 = scmp.eq.s32.totalorder %s10, 1
    %p27 = por %p25, %p26
    %p28 = scmp.ne.s32.totalorder %s20, %s23
    %p29 = scmp.eq.s32.totalorder %s10, 0
    %p30 = por %p28, %p29
    %p31 = scmp.ne.s32.totalorder %s20, %s23
    %p32 = scmp.eq.s32.totalorder %s15, 1
    %p33 = por %p31, %p32
    %p34 = scmp.ne.s32.totalorder %s23, %s24
    %p35 = scmp.eq.s32.totalorder %s15, 0
    %p36 = por %p34, %p35
    %p37 = scmp.ne.s32.totalorder %s23, %s24
    %p38 = scmp.eq.s32.totalorder %s16, 1
    %p39 = por %p37, %p38
    %p41 = scmp.ne.s32.totalorder %s24, %s40
    %p42 = scmp.eq.s32.totalorder %s16, 0
    %p43 = por %p41, %p42
    %s45 = sadd.s32 %s44, 1
    %p48 = scmp.eq.s32.totalorder %s10, 1
    %p49 = scmp.ne.s32.totalorder %s44, %s46
    %p50 = scmp.eq.s32.totalorder %s10, 0
    %p51 = por %p49, %p50
    %p52 = scmp.ne.s32.totalorder %s44, %s46
    %p53 = scmp.eq.s32.totalorder %s15, 1
    %p54 = por %p52, %p53
    %p55 = scmp.ne.s32.totalorder %s46, %s47
    %p56 = scmp.eq.s32.totalorder %s15, 0
    %p57 = por %p55, %p56
    %p58 = scmp.ne.s32.totalorder %s46, %s47
    %p59 = scmp.eq.s32.totalorder %s16, 1
    %p60 = por %p58, %p59
    %p62 = scmp.ne.s32.totalorder %s47, %s61
    %p63 = scmp.eq.s32.totalorder %s16, 0
    %p64 = por %p62, %p63
    %s66 = sadd.s32 %s65, 1
    %p69 = scmp.eq.s32.totalorder %s10, 1
    %p70 = scmp.ne.s32.totalorder %s65, %s67
    %p71 = scmp.eq.s32.totalorder %s10, 0
    %p72 = por %p70, %p71
    %p73 = scmp.ne.s32.totalorder %s65, %s67
    %p74 = scmp.eq.s32.totalorder %s15, 1
    %p75 = por %p73, %p74
    %p76 = scmp.ne.s32.totalorder %s67, %s68
    %p77 = scmp.eq.s32.totalorder %s15, 0
    %p78 = por %p76, %p77
    %p79 = scmp.ne.s32.totalorder %s67, %s68
    %p80 = scmp.eq.s32.totalorder %s16, 1
    %p81 = por %p79, %p80
    %p83 = scmp.ne.s32.totalorder %s68, %s82
    %p84 = scmp.eq.s32.totalorder %s16, 0
    %p85 = por %p83, %p84
    %s87 = sadd.s32 %s86, 1
    %p90 = scmp.eq.s32.totalorder %s10, 1
    %p91 = scmp.ne.s32.totalorder %s86, %s88
    %p92 = scmp.eq.s32.totalorder %s10, 0
    %p93 = por %p91, %p92
    %p94 = scmp.ne.s32.totalorder %s86, %s88
    %p95 = scmp.eq.s32.totalorder %s15, 1
    %p96 = por %p94, %p95
    %p97 = scmp.ne.s32.totalorder %s88, %s89
    %p98 = scmp.eq.s32.totalorder %s15, 0
    %p99 = por %p97, %p98
    %p100 = scmp.ne.s32.totalorder %s88, %s89
    %p101 = scmp.eq.s32.totalorder %s16, 1
    %p102 = por %p100, %p101
    %p104 = scmp.ne.s32.totalorder %s89, %s103
    %p105 = scmp.eq.s32.totalorder %s16, 0
    %p106 = por %p104, %p105
    %s107 = ssub.s32 %s10, %s17
    %p108 = scmp.eq.s32.totalorder %s107, 0
    %s110 = sadd.s32 %s109, 1
    %s111 = scalar_select %p108, %s109, %s110
    %p114 = pneg %p108
    %p115 = scmp.eq.s32.totalorder %s10, 1
    %p116 = por %p114, %p115
    %p117 = scmp.ne.s32.totalorder %s109, %s112
    %p118 = scmp.eq.s32.totalorder %s10, 0
    %p119 = por %p117, %p118
    %p120 = scmp.ne.s32.totalorder %s109, %s112
    %p121 = scmp.eq.s32.totalorder %s15, 1
    %p122 = por %p120, %p121
    %p123 = scmp.ne.s32.totalorder %s112, %s113
    %p124 = scmp.eq.s32.totalorder %s15, 0
    %p125 = por %p123, %p124
    %p126 = scmp.ne.s32.totalorder %s112, %s113
    %p127 = scmp.eq.s32.totalorder %s16, 1
    %p128 = por %p126, %p127
    %p130 = scmp.ne.s32.totalorder %s113, %s129
    %p131 = scmp.eq.s32.totalorder %s16, 0
    %p132 = por %p130, %p131
    %p133 = scmp.le.s32.totalorder 1, %s10
    %p134 = scmp.lt.s32.totalorder %s10, 3
    %p135 = pnand %p133, %p134
    %p136 = pneg %p135
    // Predicated region
    $region9: #{tpu_custom_call.1} parent=5 // pred_check
      _
    $region10: #{tpu_custom_call.1} parent=5 // pred_check_branch
      %138 = sbr.rel (%p135) target = $region12
    $region11: #{tpu_custom_call.1} parent=5 // pred_region
      %s139 = ssub.s32 %s10, 1
      // Predicated region
      $region13: #{tpu_custom_call.1} parent=11 // pred_check
        %p140 = pneg %p57
      $region14: #{tpu_custom_call.1} parent=11 // pred_check_branch
        %142 = sbr.rel (%p140) target = $region16
      $region15: #{tpu_custom_call.1} parent=11 // pred_region
        _
      $region16: #{tpu_custom_call.1} parent=11 // pred_fallthru
        _
      // Predicated region
      $region17: #{tpu_custom_call.1} parent=11 // pred_check
        %p143 = pneg %p78
      $region18: #{tpu_custom_call.1} parent=11 // pred_check_branch
        %145 = sbr.rel (%p143) target = $region20
      $region19: #{tpu_custom_call.1} parent=11 // pred_region
        _
      $region20: #{tpu_custom_call.1} parent=11 // pred_fallthru
        _
      // Predicated region
      $region21: #{tpu_custom_call.1} parent=11 // pred_check
        %p146 = pneg %p99
      $region22: #{tpu_custom_call.1} parent=11 // pred_check_branch
        %148 = sbr.rel (%p146) target = $region24
      $region23: #{tpu_custom_call.1} parent=11 // pred_region
        _
      $region24: #{tpu_custom_call.1} parent=11 // pred_fallthru
        _
    $region12: #{tpu_custom_call.1} parent=5 // pred_fallthru
      _
    %p149 = scmp.lt.s32.totalorder %s10, 2
    // Predicated region
    $region25: #{tpu_custom_call.1} parent=5 // pred_check
      %p150 = pneg %p149
    $region26: #{tpu_custom_call.1} parent=5 // pred_check_branch
      %152 = sbr.rel (%p150) target = $region28
    $region27: #{tpu_custom_call.1} parent=5 // pred_region
      // Predicated region
      $region29: #{tpu_custom_call.1} parent=27 // pred_check
        %p153 = pneg %p30
      $region30: #{tpu_custom_call.1} parent=27 // pred_check_branch
        %155 = sbr.rel (%p153) target = $region32
      $region31: #{tpu_custom_call.1} parent=27 // pred_region
        %p156 = scmp.lt.s32.totalorder %s10, 1
        %s157 = scalar_select %p156, %s10, 1
        %s158 = smul.addr %s157, 2
        %s159 = smul.addr %s158, 8
        %s160 = scalar_lea.vmem %s0, %s159
      $region32: #{tpu_custom_call.1} parent=27 // pred_fallthru
        _
    $region28: #{tpu_custom_call.1} parent=5 // pred_fallthru
      _
    %p161 = scmp.le.s32.totalorder 1, %s10
    %p162 = scmp.lt.s32.totalorder %s10, 3
    %p163 = pnand %p161, %p162
    %p164 = pneg %p163
    // Predicated region
    $region33: #{tpu_custom_call.1} parent=5 // pred_check
      _
    $region34: #{tpu_custom_call.1} parent=5 // pred_check_branch
      %166 = sbr.rel (%p163) target = $region36
    $region35: #{tpu_custom_call.1} parent=5 // pred_region
      %s167 = ssub.s32 %s10, 1
      %p168 = scmp.lt.s32.totalorder %s15, 1
      %s169 = scalar_select %p168, %s15, 1
      %s170 = smul.addr %s169, 2
      %s171 = smul.addr %s170, 8
      %s172 = scalar_lea.vmem %s0, %s171
      %p173 = pneg %p36
      %p174 = pneg %p33
      %p175 = pneg %p57
      %p176 = pneg %p54
      %p177 = pneg %p78
      %p178 = pneg %p75
      %p179 = pneg %p99
      %p180 = pneg %p96
      %p181 = pneg %p125
      %p182 = pneg %p122
      %p183 = scmp.lt.s32.totalorder %s15, 1
      %s184 = scalar_select %p183, %s15, 1
      %s185 = smul.addr %s184, 8
      %s186 = scalar_lea.vmem %s4, %s185
      %p187 = scmp.lt.s32.totalorder %s15, 1
      %s188 = scalar_select %p187, %s15, 1
      %s189 = smul.addr %s188, 2
      %s190 = smul.addr %s189, 8
      %s191 = scalar_lea.vmem %s0, %s190
      %p192 = scmp.lt.s32.totalorder %s15, 1
      %s193 = scalar_select %p192, %s15, 1
      %s194 = smul.addr %s193, 8
      %s195 = scalar_lea.vmem %s4, %s194
      %v197 = vld [vmem:[%s1] sm:$0xf]
      %v198 = vld [vmem:[%s2] sm:$0xff]
      %v199 = vld [vmem:[%s3] sm:$0x3]
      %v200 = vadd.f32 %v199, 1e-10
      %v201 = vrcp.pop %v200
      %v202 = vld [vmem:[%s191] sm:$0xff]
      %v203 = vld [vmem:[%s191 + $0x8] sm:$0xff]
      %vm204 = vcmask 31744
      %v205 = vsel %vm204, %v202, 0.0
      %v206 = vsel %vm204, %v203, 0.0
      %v207 = vadd.f32 %v205, %v206
      %v208 = vrot.slane %v207, 4
      %v209 = vadd.f32 %v207, %v208
      %v210 = vrot.slane %v209, 2
      %v211 = vadd.f32 %v209, %v210
      %v212 = vrot.slane %v211, 1
      %v213 = vadd.f32 %v211, %v212
      %v214 = vrcp.pop 16.0
      %v215 = vmul.f32 16.0, %v214
      %v216 = vsub.f32 1.0, %v215
      %v217 = vmul.f32 %v214, %v216
      %v218 = vadd.f32 %v214, %v217
      %vm219 = vweird.f32 %v214
      %v220 = vsel %vm219, %v214, %v218
      %v221 = vmul.f32 %v213, %v220
      %v222 = vsub.f32 %v202, %v221
      %v223 = vsub.f32 %v203, %v221
      %v224 = vmul.f32 %v222, %v222
      %v225 = vmul.f32 %v223, %v223
      %v226 = vsel %vm204, %v224, 0.0
      %v227 = vsel %vm204, %v225, 0.0
      %v228 = vadd.f32 %v226, %v227
      %v229 = vrot.slane %v228, 4
      %v230 = vadd.f32 %v228, %v229
      %v231 = vrot.slane %v230, 2
      %v232 = vadd.f32 %v230, %v231
      %v233 = vrot.slane %v232, 1
      %v234 = vadd.f32 %v232, %v233
      %v235 = vmul.f32 %v234, %v220
      %v236 = vadd.f32 %v235, 1e-05
      %v237 = vrsqrt.pop %v236
      %v238 = vmul.f32 %v237, %v236
      %v239 = vmul.f32 %v238, %v237
      %v240 = vmul.f32 0.5, %v239
      %v241 = vsub.f32 1.5, %v240
      %v242 = vmul.f32 %v237, %v241
      %vm243 = vweird.f32 %v236
      %vm244 = vweird.f32 %v237
      %vm245 = vmor %vm243, %vm244
      %v246 = vsel %vm245, %v237, %v242
      %v247 = vmul.f32 %v236, %v246
      %v248 = vmul.f32 %v222, %v246
      %v249 = vmul.f32 %v223, %v246
      %v250 = vperm.slane %v199, 0
      %v251 = vmul.f32 %v248, %v250
      %v252 = vmul.f32 %v249, %v250
      %v253 = vperm.slane %v199, 1
      %v254 = vadd.f32 %v251, %v253
      %v255 = vadd.f32 %v252, %v253
      %v256 = vpack.c.bf16 %v255, %v254
      %258 = vset.pattern.permute.xlu0 0
      %259 = vperm.xlu0 %258, %v198
      %v260 = vpop.permute.xlu0 %259
      %vm262 = vcmask 130048
      %v264 = vsel %vm262, %v197, 0
      %266 = vmatpush.bf16.msra.mxu0 0
      %267 = vmatpush.bf16.msra.mxu0 0
      %268 = vmatpush.bf16.msra.mxu0 0
      %269 = vmatpush.bf16.msra.mxu0 0
      %270 = vmatpush.bf16.msra.mxu0 0
      %271 = vmatpush.bf16.msra.mxu0 0
      %272 = vmatpush.bf16.msra.mxu0 0
      %273 = vmatpush.bf16.msra.mxu0 %v256
      %274 = vmatmul.bf16.gmra.mxu0 %v264
      %v275 = vpop.f32.mrf.mxu0
      %v276 = vadd.f32 %v260, %v275
      %v277 = vpop.f32.mrf.mxu0
      %278 = vdwg.mxu0
      %v279 = vsub.f32 %v276, %v253
      %v280 = vperm.slane %v201, 0
      %v281 = vmul.f32 %v279, %v280
      %v282 = vmul.f32 %v281, %v247
      %v283 = vadd.f32 %v282, %v221
      %284 = vst.msk [vmem:[%s195] sm:$0xff] %vm204, %v283
      %p285 = scmp.lt.s32.totalorder %s15, 1
      %s286 = scalar_select %p285, %s15, 1
      %s287 = smul.addr %s286, 8
      %s288 = scalar_lea.vmem %s4, %s287
      // Predicated region
      $region37: #{tpu_custom_call.1} parent=35 // pred_check
        %p289 = pneg %p122
      $region38: #{tpu_custom_call.1} parent=35 // pred_check_branch
        %291 = sbr.rel (%p289) target = $region40
      $region39: #{tpu_custom_call.1} parent=35 // pred_region
        _
      $region40: #{tpu_custom_call.1} parent=35 // pred_fallthru
        _
    $region36: #{tpu_custom_call.1} parent=5 // pred_fallthru
      _
    %p292 = scmp.le.s32.totalorder 2, %s10
    // Predicated region
    $region41: #{tpu_custom_call.1} parent=5 // pred_check
      %p293 = pneg %p292
    $region42: #{tpu_custom_call.1} parent=5 // pred_check_branch
      %295 = sbr.rel (%p293) target = $region44
    $region43: #{tpu_custom_call.1} parent=5 // pred_region
      %s296 = ssub.s32 %s10, 2
      // Predicated region
      $region45: #{tpu_custom_call.1} parent=43 // pred_check
        %p297 = pneg %p128
      $region46: #{tpu_custom_call.1} parent=43 // pred_check_branch
        %299 = sbr.rel (%p297) target = $region48
      $region47: #{tpu_custom_call.1} parent=43 // pred_region
        %p300 = scmp.lt.s32.totalorder %s16, 1
        %s301 = scalar_select %p300, %s16, 1
        %s302 = smul.addr %s301, 8
        %s303 = scalar_lea.vmem %s4, %s302
      $region48: #{tpu_custom_call.1} parent=43 // pred_fallthru
        _
    $region44: #{tpu_custom_call.1} parent=5 // pred_fallthru
      _
  $region6: #{tpu_custom_call.1} parent=0 // loop_footer
    %s14 = sadd.s32 1, %s10
  $region7: #{tpu_custom_call.1} parent=0 // loop_footer_branch
    %9 = sbr.rel target = $region3
  $region8: #{tpu_custom_call.1} parent=0 // loop_exit
    _

</llo_original>
